<compile_context>
chip_gen: v6e
topology: v6e:2x2x1
jax: 0.10.0
libtpu: 0.0.40
codegen_flags: <defaults>
</compile_context>

<pallas_src>
import jax
import jax.numpy as jnp
from jax.experimental import pallas as pl
from jax.experimental.pallas import tpu as pltpu

_HIDDEN = 30


def _round_up(x, m):
    return (x + m - 1) // m * m


def _dims(input_size, nb_action):
    in_pad = _round_up(input_size + 1, 8)            # +1: ones column for bias-1
    lane = max(128, _round_up(nb_action, 128))       # hidden(+b2 lane) / output width
    return in_pad, lane


def pack_params(w1, b1, w2, b2, dtype=jnp.float32):
    """Pack PyTorch-layout weights into one lane-dense parameter slab.

    w1: (30, input_size)  b1: (30,)  w2: (nb_action, 30)  b2: (nb_action,)
    Layout of the returned (in_pad + lane, lane) array:
      rows [0:input_size)        cols [0:30)        = w1.T
      row  input_size            cols [0:30)        = b1,  col 30 = 1.0
      rows [in_pad:in_pad+30)    cols [0:nb_action) = w2.T
      row  in_pad + 30           cols [0:nb_action) = b2
    """
    input_size = w1.shape[1]
    nb_action = w2.shape[0]
    in_pad, lane = _dims(input_size, nb_action)
    p1 = jnp.zeros((in_pad, lane), jnp.float32)
    p1 = p1.at[:input_size, :_HIDDEN].set(w1.T)
    p1 = p1.at[input_size, :_HIDDEN].set(b1)
    p1 = p1.at[input_size, _HIDDEN].set(1.0)         # "ones" hidden lane -> picks up b2
    p2 = jnp.zeros((lane, lane), jnp.float32)
    p2 = p2.at[:_HIDDEN, :nb_action].set(w2.T)
    p2 = p2.at[_HIDDEN, :nb_action].set(b2)
    return jnp.concatenate([p1, p2], axis=0).astype(dtype)


def _mlp_kernel(x_ref, p_ref, o_ref):
    # x: (TB, in_pad) augmented state (last live col is 1.0)
    # p: (in_pad + lane, lane) packed, pre-transposed, bias-folded params
    # o: (TB, lane) lane-dense q-values (cols >= nb_action are zero)
    in_pad = x_ref.shape[1]
    lane = o_ref.shape[1]
    xa = x_ref[...]
    w1 = p_ref[0:in_pad, :]                 # sublane-aligned, full-lane view
    w2 = p_ref[in_pad:in_pad + lane, :]     # sublane-aligned, full-lane view
    # fc1 + bias (folded) + ReLU; f32 MXU accumulation, f32 epilogue.
    h = jnp.maximum(jnp.dot(xa, w1, preferred_element_type=jnp.float32), 0.0)
    # hidden lane 30 is exactly 1.0, so row 30 of w2 contributes b2.
    q = jnp.dot(h.astype(w2.dtype), w2, preferred_element_type=jnp.float32)
    o_ref[...] = q.astype(o_ref.dtype)


def network_forward(state, packed_params, *, nb_action, compute_dtype=jnp.float32):
    """state: (B, input_size) f32 -> q_values: (B, nb_action) f32."""
    B, input_size = state.shape
    in_pad, lane = _dims(input_size, nb_action)
    assert packed_params.shape == (in_pad + lane, lane)

    # Augmented, zero-padded input: cols [0:input_size) = state, col input_size = 1.
    xa = jnp.zeros((B, in_pad), compute_dtype)
    xa = xa.at[:, :input_size].set(state.astype(compute_dtype))
    xa = xa.at[:, input_size].set(jnp.asarray(1.0, compute_dtype))
    params = packed_params.astype(compute_dtype)

    # Batch tiling: single block for small B; big row tiles for large B so the
    # launch cost is amortized and the batch axis shards across TensorCores.
    if B % 256 == 0:
        tb = 256
    elif B % 128 == 0:
        tb = 128
    else:
        tb = B
    grid = (B // tb,)

    out = pl.pallas_call(
        _mlp_kernel,
        out_shape=jax.ShapeDtypeStruct((B, lane), jnp.float32),
        grid_spec=pltpu.PrefetchScalarGridSpec(
            num_scalar_prefetch=0,
            grid=grid,
            in_specs=[
                pl.BlockSpec((tb, in_pad), lambda i: (i, 0)),
                pl.BlockSpec((in_pad + lane, lane), lambda i: (0, 0)),  # resident weights
            ],
            out_specs=pl.BlockSpec((tb, lane), lambda i: (i, 0)),
        ),
        compiler_params=pltpu.CompilerParams(
            dimension_semantics=("parallel",),
        ),
    )(xa, params)
    return out[:, :nb_action]


def init_params(key, input_size, nb_action):
    """Deterministic PyTorch-style uniform(-1/sqrt(fan_in), 1/sqrt(fan_in)) init."""
    k1, k2, k3, k4 = jax.random.split(key, 4)
    bound1 = 1.0 / jnp.sqrt(jnp.float32(input_size))
    bound2 = 1.0 / jnp.sqrt(jnp.float32(_HIDDEN))
    w1 = jax.random.uniform(k1, (_HIDDEN, input_size), jnp.float32, -bound1, bound1)
    b1 = jax.random.uniform(k2, (_HIDDEN,), jnp.float32, -bound1, bound1)
    w2 = jax.random.uniform(k3, (nb_action, _HIDDEN), jnp.float32, -bound2, bound2)
    b2 = jax.random.uniform(k4, (nb_action,), jnp.float32, -bound2, bound2)
    return w1, b1, w2, b2


if __name__ == "__main__":
    input_size = 5   # classic usage of this module (sensor signals + orientation)
    nb_action = 3
    batch = 2

    key = jax.random.PRNGKey(0)
    k_params, k_state = jax.random.split(key)
    w1, b1, w2, b2 = init_params(k_params, input_size, nb_action)
    state = jax.random.normal(k_state, (batch, input_size), jnp.float32)

    ref = jnp.maximum(state @ w1.T + b1, 0.0) @ w2.T + b2

    # f32 path: exact semantics of the PyTorch module.
    params_f32 = pack_params(w1, b1, w2, b2, dtype=jnp.float32)
    q_values = network_forward(state, params_f32, nb_action=nb_action,
                               compute_dtype=jnp.float32)
    jax.block_until_ready(q_values)
    assert q_values.shape == (batch, nb_action)
    assert jnp.allclose(q_values, ref, atol=1e-4, rtol=1e-4)

    # bf16 matmul-operand path (MXU-native on v5e/v6e/v7x); f32 accumulation
    # and f32 ReLU epilogue, so only operand rounding differs.
    params_bf16 = pack_params(w1, b1, w2, b2, dtype=jnp.bfloat16)
    q_bf16 = network_forward(state, params_bf16, nb_action=nb_action,
                             compute_dtype=jnp.bfloat16)
    jax.block_until_ready(q_bf16)
    assert q_bf16.shape == (batch, nb_action)
    assert jnp.allclose(q_bf16, ref, atol=5e-2, rtol=5e-2)

    print("KERNEL_OK")
</pallas_src>

<mosaic_0001>
module attributes {stable_mosaic.version = 11 : i64} {
  func.func @_mlp_kernel(%arg0: i32, %arg1: memref<2x8xf32, #tpu.memory_space<vmem>>, %arg2: memref<136x128xf32, #tpu.memory_space<vmem>>, %arg3: memref<2x128xf32, #tpu.memory_space<vmem>>) attributes {dimension_semantics = [#tpu.dimension_semantics<parallel>], iteration_bounds = array<i64: 1>, scalar_prefetch = 0 : i64, scratch_operands = 0 : i64, tpu.core_type = #tpu.core_type<tc>, window_params = [{transform_indices = @transform_0, window_bounds = array<i64: 2, 8>}, {pipeline_mode = #tpu.pipeline_mode<synchronous>, transform_indices = @transform_1, window_bounds = array<i64: 136, 128>}, {transform_indices = @transform_2, window_bounds = array<i64: 2, 128>}]} {
    %c0 = arith.constant 0 : index
    %c0_0 = arith.constant 0 : index
    %0 = vector.load %arg1[%c0, %c0_0] : memref<2x8xf32, #tpu.memory_space<vmem>>, vector<2x8xf32>
    %c0_1 = arith.constant 0 : index
    %c0_2 = arith.constant 0 : index
    %1 = vector.load %arg2[%c0_1, %c0_2] : memref<136x128xf32, #tpu.memory_space<vmem>>, vector<8x128xf32>
    %c8 = arith.constant 8 : index
    %c0_3 = arith.constant 0 : index
    %2 = vector.load %arg2[%c8, %c0_3] : memref<136x128xf32, #tpu.memory_space<vmem>>, vector<128x128xf32>
    %cst = arith.constant dense<0.000000e+00> : vector<2x128xf32>
    %3 = tpu.matmul %0, %1, %cst {dimension_numbers = #tpu.dot_dimension_numbers<[1], [0], [0], [1], [0, 0, 1, 1], [], []>} : vector<2x8xf32>, vector<8x128xf32>, vector<2x128xf32> -> vector<2x128xf32>
    %cst_4 = arith.constant 0.000000e+00 : f32
    %4 = vector.broadcast %cst_4 : f32 to vector<2x128xf32>
    %5 = arith.maximumf %3, %4 : vector<2x128xf32>
    %cst_5 = arith.constant dense<0.000000e+00> : vector<2x128xf32>
    %6 = tpu.matmul %5, %2, %cst_5 {dimension_numbers = #tpu.dot_dimension_numbers<[1], [0], [0], [1], [0, 0, 1, 1], [], []>} : vector<2x128xf32>, vector<128x128xf32>, vector<2x128xf32> -> vector<2x128xf32>
    %c0_6 = arith.constant 0 : index
    %c0_7 = arith.constant 0 : index
    %7 = vector.load %arg3[%c0_6, %c0_7] : memref<2x128xf32, #tpu.memory_space<vmem>>, vector<2x128xf32>
    tpu.vector_store %arg3[%c0_6, %c0_7], %6 {strides = array<i32>} : memref<2x128xf32, #tpu.memory_space<vmem>>, vector<2x128xf32>,
    return
  }
  func.func @transform_0(%arg0: i32) -> (i32, i32) {
    %c0_i32 = arith.constant 0 : i32
    %c0_i32_0 = arith.constant 0 : i32
    return %arg0, %c0_i32 : i32, i32
  }
  func.func @transform_1(%arg0: i32) -> (i32, i32) {
    %c0_i32 = arith.constant 0 : i32
    %c0_i32_0 = arith.constant 0 : i32
    %c0_i32_1 = arith.constant 0 : i32
    return %c0_i32, %c0_i32_0 : i32, i32
  }
  func.func @transform_2(%arg0: i32) -> (i32, i32) {
    %c0_i32 = arith.constant 0 : i32
    %c0_i32_0 = arith.constant 0 : i32
    return %arg0, %c0_i32 : i32, i32
  }
}

</mosaic_0001>

<llo_original>
// kernel: tpu_custom_call.1
$region0: #{tpu_custom_call.1}
  #allocation0 [shape = 'u32[]', space=smem, size = 0x4, offset = 0x4, fixed_abs, tag = 'smem constant byte address 0x4 - core index']
  #allocation1 [shape = 'u32[144,128]{1,0:T(1,128)}', space=vmem, size = 0x12000, scoped, tag = 'internal scratch']
  %s0 = inlined_call_operand.hbm [shape: f32[2,8], index: 0, kind: input, shape index: {}]
  %s1 = inlined_call_operand.hbm [shape: f32[136,128], index: 1, kind: input, shape index: {}]
  %s2 = inlined_call_operand.hbm [shape: f32[2,128], index: 2, kind: output, shape index: {}]
  %s3 = sld [smem:[#allocation0]]
  $region26: #{tpu_custom_call.1} parent=0
    _
  %s5 = ssub.s32 1, %s3
  %s6 = scalar_select 0, %s5, %s3
  $region1: #{tpu_custom_call.1} parent=0
    #allocation2 [shape = 'u8[1024]{0}', space=vmem, size = 0x400, scoped, tag = 'input window, operand 0, single buffered']
    #allocation3 [shape = 's32[1]{0}', space=sflag, size = 0x4, scoped, tag = 'scoped memory for tpu_custom_call.1']
    #allocation4 [shape = 's32[1]{0}', space=sflag, size = 0x4, scoped, tag = 'scoped memory for tpu_custom_call.1']
    #allocation5 [shape = 'u8[69632]{0}', space=vmem, size = 0x11000, scoped, tag = 'input window, operand 1, single buffered']
    #allocation6 [shape = 's32[1]{0}', space=sflag, size = 0x4, scoped, tag = 'scoped memory for tpu_custom_call.1']
    #allocation7 [shape = 'u8[1024]{0}', space=vmem, size = 0x400, scoped, tag = 'output window, operand 0, single buffered']
    %7 = vsyncpa [#allocation3], 0
    %8 = vsyncpa [#allocation6], 0
    %9 = vsyncpa [#allocation4], 0
    // Predicated region
    $region2: #{tpu_custom_call.1} parent=1 // pred_check
      _
    $region3: #{tpu_custom_call.1} parent=1 // pred_check_branch
      %11 = sbr.rel (0) target = $region5
    $region4: #{tpu_custom_call.1} parent=1 // pred_region
      %s13 = ssub.s32 32, 32
      %14 = vsyncadd [#allocation3], %s13
      %s16 = sshll.u32 [#allocation2], 4
      %s17 = int_to_ptr.vmem [resolvable:$true] %s16
      %19 = dma.hbm_to_vmem [thread:$0]  %s0, 32, %s17, [#allocation3]
    $region5: #{tpu_custom_call.1} parent=1 // pred_fallthru
      _
    // Predicated region
    $region6: #{tpu_custom_call.1} parent=1 // pred_check
      _
    $region7: #{tpu_custom_call.1} parent=1 // pred_check_branch
      %21 = sbr.rel (0) target = $region9
    $region8: #{tpu_custom_call.1} parent=1 // pred_region
      %s23 = ssub.s32 2176, 2176
      %24 = vsyncadd [#allocation6], %s23
      %s25 = sshll.u32 [#allocation5], 4
      %s26 = int_to_ptr.vmem [resolvable:$true] %s25
      %31 = dma.hbm_to_vmem [thread:$0]  %s1, 2176, %s26, [#allocation6], 128, 128, 8
    $region9: #{tpu_custom_call.1} parent=1 // pred_fallthru
      _
    // Predicated region
    $region10: #{tpu_custom_call.1} parent=1 // pred_check
      _
    $region11: #{tpu_custom_call.1} parent=1 // pred_check_branch
      %33 = sbr.rel (0) target = $region13
    $region12: #{tpu_custom_call.1} parent=1 // pred_region
      %34 = dma.done [#allocation3], 32
    $region13: #{tpu_custom_call.1} parent=1 // pred_fallthru
      _
    // Predicated region
    $region14: #{tpu_custom_call.1} parent=1 // pred_check
      _
    $region15: #{tpu_custom_call.1} parent=1 // pred_check_branch
      %36 = sbr.rel (0) target = $region17
    $region16: #{tpu_custom_call.1} parent=1 // pred_region
      %37 = dma.done [#allocation6], 2176
    $region17: #{tpu_custom_call.1} parent=1 // pred_fallthru
      _
    %v38 = vld [vmem:[#allocation2] sm:$0x3]
    %v39 = vld [vmem:[#allocation5] sm:$0xff]
    %v40 = vld [vmem:[#allocation5 + $0x8] sm:$0xff]
    %v41 = vld [vmem:[#allocation5 + $0x10] sm:$0xff]
    %v42 = vld [vmem:[#allocation5 + $0x18] sm:$0xff]
    %v43 = vld [vmem:[#allocation5 + $0x20] sm:$0xff]
    %v44 = vld [vmem:[#allocation5 + $0x28] sm:$0xff]
    %v45 = vld [vmem:[#allocation5 + $0x30] sm:$0xff]
    %v46 = vld [vmem:[#allocation5 + $0x38] sm:$0xff]
    %v47 = vld [vmem:[#allocation5 + $0x40] sm:$0xff]
    %v48 = vld [vmem:[#allocation5 + $0x48] sm:$0xff]
    %v49 = vld [vmem:[#allocation5 + $0x50] sm:$0xff]
    %v50 = vld [vmem:[#allocation5 + $0x58] sm:$0xff]
    %v51 = vld [vmem:[#allocation5 + $0x60] sm:$0xff]
    %v52 = vld [vmem:[#allocation5 + $0x68] sm:$0xff]
    %v53 = vld [vmem:[#allocation5 + $0x70] sm:$0xff]
    %v54 = vld [vmem:[#allocation5 + $0x78] sm:$0xff]
    %v55 = vld [vmem:[#allocation5 + $0x80] sm:$0xff]
    %vm56 = vcmask 64512
    %v58 = vsel %vm56, %v38, 0
    %60 = vmatprep.subr.mxu0 0.0
    %61 = vmatpush1.msra.mxu0 0.0
    %62 = vmatprep.subr.mxu0 0.0
    %63 = vmatpush1.msra.mxu0 0.0
    %64 = vmatprep.subr.mxu0 0.0
    %65 = vmatpush1.msra.mxu0 0.0
    %66 = vmatprep.subr.mxu0 0.0
    %67 = vmatpush1.msra.mxu0 0.0
    %68 = vmatprep.subr.mxu0 0.0
    %69 = vmatpush1.msra.mxu0 0.0
    %70 = vmatprep.subr.mxu0 0.0
    %71 = vmatpush1.msra.mxu0 0.0
    %72 = vmatprep.subr.mxu0 0.0
    %73 = vmatpush1.msra.mxu0 0.0
    %74 = vmatprep.subr.mxu0 0.0
    %75 = vmatpush1.msra.mxu0 0.0
    %76 = vmatprep.subr.mxu0 0.0
    %77 = vmatpush1.msra.mxu0 0.0
    %78 = vmatprep.subr.mxu0 0.0
    %79 = vmatpush1.msra.mxu0 0.0
    %80 = vmatprep.subr.mxu0 0.0
    %81 = vmatpush1.msra.mxu0 0.0
    %82 = vmatprep.subr.mxu0 0.0
    %83 = vmatpush1.msra.mxu0 0.0
    %84 = vmatprep.subr.mxu0 0.0
    %85 = vmatpush1.msra.mxu0 0.0
    %86 = vmatprep.subr.mxu0 0.0
    %87 = vmatpush1.msra.mxu0 0.0
    %88 = vmatprep.subr.mxu0 0.0
    %89 = vmatpush1.msra.mxu0 0.0
    %90 = vmatprep.subr.mxu0 0.0
    %91 = vmatpush1.msra.mxu0 %v39
    %92 = vmatprep.subr.mxu0 0.0
    %93 = vmatpush2.msra.mxu0 0.0
    %94 = vmatprep.subr.mxu0 0.0
    %95 = vmatpush2.msra.mxu0 0.0
    %96 = vmatprep.subr.mxu0 0.0
    %97 = vmatpush2.msra.mxu0 0.0
    %98 = vmatprep.subr.mxu0 0.0
    %99 = vmatpush2.msra.mxu0 0.0
    %100 = vmatprep.subr.mxu0 0.0
    %101 = vmatpush2.msra.mxu0 0.0
    %102 = vmatprep.subr.mxu0 0.0
    %103 = vmatpush2.msra.mxu0 0.0
    %104 = vmatprep.subr.mxu0 0.0
    %105 = vmatpush2.msra.mxu0 0.0
    %106 = vmatprep.subr.mxu0 0.0
    %107 = vmatpush2.msra.mxu0 0.0
    %108 = vmatprep.subr.mxu0 0.0
    %109 = vmatpush2.msra.mxu0 0.0
    %110 = vmatprep.subr.mxu0 0.0
    %111 = vmatpush2.msra.mxu0 0.0
    %112 = vmatprep.subr.mxu0 0.0
    %113 = vmatpush2.msra.mxu0 0.0
    %114 = vmatprep.subr.mxu0 0.0
    %115 = vmatpush2.msra.mxu0 0.0
    %116 = vmatprep.subr.mxu0 0.0
    %117 = vmatpush2.msra.mxu0 0.0
    %118 = vmatprep.subr.mxu0 0.0
    %119 = vmatpush2.msra.mxu0 0.0
    %120 = vmatprep.subr.mxu0 0.0
    %121 = vmatpush2.msra.mxu0 0.0
    %122 = vmatprep.subr.mxu0 0.0
    %123 = vmatpush2.msra.mxu0 0.0
    %124 = vmatprep.mubr.f32.mxu0 0.0
    %125 = vmatmul.mubr.f32.gmra.mxu0 %v58
    %v126 = vpop.f32.mrf.mxu0
    %v127 = vadd.f32 0.0, %v126
    %v128 = vpop.f32.mrf.mxu0
    %129 = vdwg.mxu0
    %v130 = vmax.f32 %v127, 0.0
    %131 = vmatprep.subr.mxu0 0.0
    %132 = vmatpush1.msra.mxu0 %v55
    %133 = vmatprep.subr.mxu0 0.0
    %134 = vmatpush1.msra.mxu0 %v54
    %135 = vmatprep.subr.mxu0 0.0
    %136 = vmatpush1.msra.mxu0 %v53
    %137 = vmatprep.subr.mxu0 0.0
    %138 = vmatpush1.msra.mxu0 %v52
    %139 = vmatprep.subr.mxu0 0.0
    %140 = vmatpush1.msra.mxu0 %v51
    %141 = vmatprep.subr.mxu0 0.0
    %142 = vmatpush1.msra.mxu0 %v50
    %143 = vmatprep.subr.mxu0 0.0
    %144 = vmatpush1.msra.mxu0 %v49
    %145 = vmatprep.subr.mxu0 0.0
    %146 = vmatpush1.msra.mxu0 %v48
    %147 = vmatprep.subr.mxu0 0.0
    %148 = vmatpush1.msra.mxu0 %v47
    %149 = vmatprep.subr.mxu0 0.0
    %150 = vmatpush1.msra.mxu0 %v46
    %151 = vmatprep.subr.mxu0 0.0
    %152 = vmatpush1.msra.mxu0 %v45
    %153 = vmatprep.subr.mxu0 0.0
    %154 = vmatpush1.msra.mxu0 %v44
    %155 = vmatprep.subr.mxu0 0.0
    %156 = vmatpush1.msra.mxu0 %v43
    %157 = vmatprep.subr.mxu0 0.0
    %158 = vmatpush1.msra.mxu0 %v42
    %159 = vmatprep.subr.mxu0 0.0
    %160 = vmatpush1.msra.mxu0 %v41
    %161 = vmatprep.subr.mxu0 0.0
    %162 = vmatpush1.msra.mxu0 %v40
    %163 = vmatprep.subr.mxu0 0.0
    %164 = vmatpush2.msra.mxu0 0.0
    %165 = vmatprep.subr.mxu0 0.0
    %166 = vmatpush2.msra.mxu0 0.0
    %167 = vmatprep.subr.mxu0 0.0
    %168 = vmatpush2.msra.mxu0 0.0
    %169 = vmatprep.subr.mxu0 0.0
    %170 = vmatpush2.msra.mxu0 0.0
    %171 = vmatprep.subr.mxu0 0.0
    %172 = vmatpush2.msra.mxu0 0.0
    %173 = vmatprep.subr.mxu0 0.0
    %174 = vmatpush2.msra.mxu0 0.0
    %175 = vmatprep.subr.mxu0 0.0
    %176 = vmatpush2.msra.mxu0 0.0
    %177 = vmatprep.subr.mxu0 0.0
    %178 = vmatpush2.msra.mxu0 0.0
    %179 = vmatprep.subr.mxu0 0.0
    %180 = vmatpush2.msra.mxu0 0.0
    %181 = vmatprep.subr.mxu0 0.0
    %182 = vmatpush2.msra.mxu0 0.0
    %183 = vmatprep.subr.mxu0 0.0
    %184 = vmatpush2.msra.mxu0 0.0
    %185 = vmatprep.subr.mxu0 0.0
    %186 = vmatpush2.msra.mxu0 0.0
    %187 = vmatprep.subr.mxu0 0.0
    %188 = vmatpush2.msra.mxu0 0.0
    %189 = vmatprep.subr.mxu0 0.0
    %190 = vmatpush2.msra.mxu0 0.0
    %191 = vmatprep.subr.mxu0 0.0
    %192 = vmatpush2.msra.mxu0 0.0
    %193 = vmatprep.subr.mxu0 0.0
    %194 = vmatpush2.msra.mxu0 0.0
    %195 = vmatprep.mubr.f32.mxu0 0.0
    %196 = vmatmul.mubr.f32.gmra.mxu0 %v130
    %v197 = vpop.f32.mrf.mxu0
    %v198 = vadd.f32 0.0, %v197
    %v199 = vpop.f32.mrf.mxu0
    %200 = vdwg.mxu0
    %201 = vst [vmem:[#allocation7] sm:$0x3] %v198
    // Predicated region
    $region18: #{tpu_custom_call.1} parent=1 // pred_check
      _
    $region19: #{tpu_custom_call.1} parent=1 // pred_check_branch
      %203 = sbr.rel (0) target = $region21
    $region20: #{tpu_custom_call.1} parent=1 // pred_region
      %s205 = ssub.s32 32, 32
      %206 = vsyncadd [#allocation4], %s205
      %s208 = sshll.u32 [#allocation7], 4
      %s209 = int_to_ptr.vmem [resolvable:$true] %s208
      %211 = dma.vmem_to_hbm [thread:$0]  %s209, 32, %s2, [#allocation4]
    $region21: #{tpu_custom_call.1} parent=1 // pred_fallthru
      _
    // Predicated region
    $region22: #{tpu_custom_call.1} parent=1 // pred_check
      _
    $region23: #{tpu_custom_call.1} parent=1 // pred_check_branch
      %213 = sbr.rel (0) target = $region25
    $region24: #{tpu_custom_call.1} parent=1 // pred_region
      %214 = dma.done [#allocation4], 32
    $region25: #{tpu_custom_call.1} parent=1 // pred_fallthru
      _
    %215 = vsyncpa [#allocation3], 1
    %216 = vsyncpa [#allocation6], 1
    %217 = vsyncpa [#allocation4], 1

</llo_original>
